<compile_context>
chip_gen: v7x
topology: tpu7x:2x2x1
jax: 0.10.0
libtpu: 0.0.40
codegen_flags: <defaults>
</compile_context>

<pallas_src>
import functools
import math

import jax
import jax.numpy as jnp
from jax.experimental import pallas as pl
from jax.experimental.pallas import tpu as pltpu


def _round_up(x, m):
    return ((x + m - 1) // m) * m


def _cdiv(a, b):
    return -(-a // b)


def _sublane_multiple(dtype):
    # Rows per packed vreg sublane group: 8 for 32-bit, 16 for bf16, 32 for int8/fp8.
    return max(8, 32 // jnp.dtype(dtype).itemsize)


def _balanced_tile(dim, tile_max, align):
    """Largest tile <= ~tile_max covering `dim` in equal, `align`-aligned blocks (<= `align` waste)."""
    dim_p = _round_up(dim, align)
    tile_max = max(align, min(_round_up(tile_max, align), dim_p))
    n_blocks = _cdiv(dim_p, tile_max)
    return _round_up(_cdiv(dim_p, n_blocks), align)


# ----------------------------- kernel bodies ------------------------------

def _linear_kernel_inplace(x_ref, w_ref, o_ref):
    """out_dtype == f32: accumulate directly into the output tile (resident across the K axis)."""
    @pl.when(pl.program_id(2) == 0)
    def _():
        o_ref[...] = jnp.zeros_like(o_ref)

    o_ref[...] += jnp.dot(x_ref[...], w_ref[...], preferred_element_type=jnp.float32)


def _linear_kernel_acc(x_ref, w_ref, o_ref, acc_ref):
    """Narrow out_dtype: f32 VMEM accumulator, one cast on the final K step."""
    k = pl.program_id(2)

    @pl.when(k == 0)
    def _():
        acc_ref[...] = jnp.zeros_like(acc_ref)

    acc_ref[...] += jnp.dot(x_ref[...], w_ref[...], preferred_element_type=jnp.float32)

    @pl.when(k == pl.num_programs(2) - 1)
    def _():
        o_ref[...] = acc_ref[...].astype(o_ref.dtype)


# ------------------------------- wrapper ----------------------------------

def linear_logits(
    features,
    w,
    labels=None,                      # signature compatibility only; ignored
    *,
    compute_dtype=jnp.bfloat16,       # bf16 MXU path by default; None = keep input dtype (e.g. exact f32)
    out_dtype=jnp.float32,
    tm_max=768,                       # large-batch M tile cap (roofline crossover on v6e)
    tn_max=512,
    tk_max=2048,
    vmem_budget_bytes=48 * 1024 * 1024,   # double-buffered working-set cap (safe on v7x 64 MiB VMEM)
):
    """Pallas equivalent of Linear.forward: logits = features.mm(w)."""
    M, K = features.shape
    K2, N = w.shape
    assert K == K2, "in_features mismatch"

    if compute_dtype is not None:
        features = features.astype(compute_dtype)
        w = w.astype(compute_dtype)
    in_dtype = features.dtype
    in_item = jnp.dtype(in_dtype).itemsize
    out_item = jnp.dtype(out_dtype).itemsize
    needs_acc = jnp.dtype(out_dtype) != jnp.dtype(jnp.float32)

    sub_m = _sublane_multiple(in_dtype)

    # M tile: a single tile for small batch -> the weight matrix is streamed exactly once.
    if M <= tm_max:
        tm = _round_up(M, sub_m)
    else:
        tm = _balanced_tile(M, tm_max, sub_m)
    # N tile: balanced and lane-aligned (no masked vst, <=128 lanes of padding waste).
    tn = _balanced_tile(N, tn_max, 128)
    # K tile: full K when it fits (fewest accumulator read-modify-writes), else balanced.
    tk = _balanced_tile(K, tk_max, 128)

    nM, nN = _cdiv(M, tm), _cdiv(N, tn)

    # Megacore: expose >=2 blocks on a parallel axis when possible (v7x has 2 TCs per chip).
    if nM == 1 and nN == 1:
        n_pad = _round_up(N, 128)
        if n_pad >= 256:
            tn = max(128, ((n_pad // 2) // 128) * 128)   # lane-dense, no extra padding
            nN = _cdiv(N, tn)

    # Shrink tk (then tn) until the double-buffered working set fits the VMEM budget.
    def working_set(tm_, tn_, tk_):
        ws = 2 * (tm_ * tk_ + tk_ * tn_) * in_item + 2 * tm_ * tn_ * out_item
        if needs_acc:
            ws += tm_ * tn_ * 4
        return ws

    while working_set(tm, tn, tk) > vmem_budget_bytes and tk > 128:
        tk = _round_up(_cdiv(tk, 2), 128)
    while working_set(tm, tn, tk) > vmem_budget_bytes and tn > 128:
        tn = _round_up(_cdiv(tn, 2), 128)
        nN = _cdiv(N, tn)

    nK = _cdiv(K, tk)
    Mp, Np, Kp = nM * tm, nN * tn, nK * tk

    # Zero-pad to tile multiples (zeros along K contribute nothing to the dot).
    # NOTE: jit the wrapper so XLA fuses/hoists this pad+cast; for a truly static inference
    # weight, pre-cast/pre-pad `w` once outside the call.
    if (Mp, Kp) != (M, K):
        features = jnp.pad(features, ((0, Mp - M), (0, Kp - K)))
    if (Kp, Np) != (K, N):
        w = jnp.pad(w, ((0, Kp - K), (0, Np - N)))

    grid = (nM, nN, nK)  # K innermost: the output tile stays resident in VMEM across the reduction.

    flops = 2 * Mp * Np * Kp
    # Account for re-streaming: x re-read per N block, w re-read per M block.
    bytes_accessed = nN * Mp * Kp * in_item + nM * Kp * Np * in_item + Mp * Np * out_item

    kernel = _linear_kernel_acc if needs_acc else _linear_kernel_inplace
    scratch_shapes = [pltpu.VMEM((tm, tn), jnp.float32)] if needs_acc else []

    vmem_limit = int(min(max(working_set(tm, tn, tk) + (4 << 20), 32 << 20), 56 << 20))

    out = pl.pallas_call(
        kernel,
        out_shape=jax.ShapeDtypeStruct((Mp, Np), out_dtype),
        grid=grid,
        in_specs=[
            pl.BlockSpec((tm, tk), lambda i, j, k: (i, k)),
            pl.BlockSpec((tk, tn), lambda i, j, k: (k, j)),
        ],
        out_specs=pl.BlockSpec((tm, tn), lambda i, j, k: (i, j)),
        scratch_shapes=scratch_shapes,
        compiler_params=pltpu.CompilerParams(
            dimension_semantics=("parallel", "parallel", "arbitrary"),
            vmem_limit_bytes=vmem_limit,
        ),
        cost_estimate=pl.CostEstimate(
            flops=flops, transcendentals=0, bytes_accessed=bytes_accessed
        ),
    )(features, w)

    if (Mp, Np) != (M, N):
        out = out[:M, :N]
    return out


def xavier_normal(key, in_features, out_features, dtype=jnp.float32):
    # Matches torch.nn.init.xavier_normal_ for a (in_features, out_features) tensor (gain=1).
    std = math.sqrt(2.0 / (in_features + out_features))
    return std * jax.random.normal(key, (in_features, out_features), dtype=dtype)


if __name__ == "__main__":
    key = jax.random.PRNGKey(0)
    k_x, k_w, k_x2, k_w2 = jax.random.split(key, 4)

    # jit so the weight pad/cast fuses with the kernel call instead of materializing per call.
    linear = jax.jit(linear_logits)
    linear_f32 = jax.jit(functools.partial(linear_logits, compute_dtype=None))

    # --- 1) Module-sized demo (small, like the PyTorch spec) -------------------
    batch, in_features, out_features = 8, 32, 16
    features = jax.random.normal(k_x, (batch, in_features), dtype=jnp.float32)
    w = xavier_normal(k_w, in_features, out_features)
    labels = jnp.zeros((batch,), dtype=jnp.int32)  # ignored, compat only

    ref = features @ w

    # Default: bf16 MXU path with f32 accumulation and f32 output.
    logits = linear(features, w, labels)
    jax.block_until_ready(logits)
    assert logits.shape == (batch, out_features)
    assert jnp.allclose(logits, ref, atol=2e-2, rtol=2e-2)

    # Exact f32 path (compute_dtype=None keeps f32 inputs).
    logits_f32 = linear_f32(features, w, labels)
    jax.block_until_ready(logits_f32)
    assert jnp.allclose(logits_f32, ref, atol=1e-5, rtol=1e-5)

    # --- 2) Classifier-style shape: small batch, larger K/N --------------------
    # Exercises: single M tile (weights streamed once), >=2 parallel N blocks, full-K tile.
    M2, K2, N2 = 24, 512, 320
    x2 = jax.random.normal(k_x2, (M2, K2), dtype=jnp.float32)
    w2 = xavier_normal(k_w2, K2, N2)
    out2 = linear(x2, w2, labels)
    jax.block_until_ready(out2)
    ref2 = x2 @ w2
    assert out2.shape == (M2, N2)
    assert jnp.allclose(out2, ref2, atol=3e-2, rtol=3e-2)

    print("KERNEL_OK")
</pallas_src>

<mosaic_0001>
module attributes {stable_mosaic.version = 11 : i64} {
  func.func @_linear_kernel_inplace(%arg0: i32, %arg1: i32, %arg2: i32, %arg3: memref<16x128xbf16, #tpu.memory_space<vmem>>, %arg4: memref<128x128xbf16, #tpu.memory_space<vmem>>, %arg5: memref<16x128xf32, #tpu.memory_space<vmem>>) attributes {dimension_semantics = [#tpu.dimension_semantics<parallel>, #tpu.dimension_semantics<parallel>, #tpu.dimension_semantics<arbitrary>], iteration_bounds = array<i64: 1, 1, 1>, scalar_prefetch = 0 : i64, scratch_operands = 0 : i64, tpu.core_type = #tpu.core_type<tc>, window_params = [{transform_indices = @transform_0, window_bounds = array<i64: 16, 128>}, {transform_indices = @transform_1, window_bounds = array<i64: 128, 128>}, {transform_indices = @transform_2, window_bounds = array<i64: 16, 128>}]} {
    %c0_i32 = arith.constant 0 : i32
    %0 = arith.cmpi eq, %arg2, %c0_i32 : i32
    %1 = arith.extui %0 : i1 to i32
    %c0_i32_0 = arith.constant 0 : i32
    %2 = arith.cmpi ne, %1, %c0_i32_0 : i32
    scf.if %2 {
      %cst_8 = arith.constant 0.000000e+00 : f32
      %9 = vector.broadcast %cst_8 : f32 to vector<16x128xf32>
      %c0_9 = arith.constant 0 : index
      %c0_10 = arith.constant 0 : index
      %10 = vector.load %arg5[%c0_9, %c0_10] : memref<16x128xf32, #tpu.memory_space<vmem>>, vector<16x128xf32>
      tpu.vector_store %arg5[%c0_9, %c0_10], %9 {strides = array<i32>} : memref<16x128xf32, #tpu.memory_space<vmem>>, vector<16x128xf32>,
    } else {
    }
    %c0 = arith.constant 0 : index
    %c0_1 = arith.constant 0 : index
    %3 = vector.load %arg5[%c0, %c0_1] : memref<16x128xf32, #tpu.memory_space<vmem>>, vector<16x128xf32>
    %c0_2 = arith.constant 0 : index
    %c0_3 = arith.constant 0 : index
    %4 = vector.load %arg3[%c0_2, %c0_3] : memref<16x128xbf16, #tpu.memory_space<vmem>>, vector<16x128xbf16>
    %c0_4 = arith.constant 0 : index
    %c0_5 = arith.constant 0 : index
    %5 = vector.load %arg4[%c0_4, %c0_5] : memref<128x128xbf16, #tpu.memory_space<vmem>>, vector<128x128xbf16>
    %cst = arith.constant dense<0.000000e+00> : vector<16x128xf32>
    %6 = tpu.matmul %4, %5, %cst {dimension_numbers = #tpu.dot_dimension_numbers<[1], [0], [0], [1], [0, 0, 1, 1], [], []>} : vector<16x128xbf16>, vector<128x128xbf16>, vector<16x128xf32> -> vector<16x128xf32>
    %7 = arith.addf %3, %6 : vector<16x128xf32>
    %c0_6 = arith.constant 0 : index
    %c0_7 = arith.constant 0 : index
    %8 = vector.load %arg5[%c0_6, %c0_7] : memref<16x128xf32, #tpu.memory_space<vmem>>, vector<16x128xf32>
    tpu.vector_store %arg5[%c0_6, %c0_7], %7 {strides = array<i32>} : memref<16x128xf32, #tpu.memory_space<vmem>>, vector<16x128xf32>,
    return
  }
  func.func @transform_0(%arg0: i32, %arg1: i32, %arg2: i32) -> (i32, i32) {
    %c0_i32 = arith.constant 0 : i32
    return %arg0, %arg2 : i32, i32
  }
  func.func @transform_1(%arg0: i32, %arg1: i32, %arg2: i32) -> (i32, i32) {
    %c0_i32 = arith.constant 0 : i32
    return %arg2, %arg1 : i32, i32
  }
  func.func @transform_2(%arg0: i32, %arg1: i32, %arg2: i32) -> (i32, i32) {
    %c0_i32 = arith.constant 0 : i32
    return %arg0, %arg1 : i32, i32
  }
}

</mosaic_0001>

<llo_original>
// kernel: linear_logits.1
$region0: #{linear_logits.1}
  #allocation0 [shape = 'u32[]', space=smem, size = 0x4, offset = 0x4, fixed_abs, tag = 'smem constant byte address 0x4 - core index']
  #allocation1 [shape = 'u32[144,128]{1,0:T(1,128)}', space=vmem, size = 0x12000, scoped, tag = 'internal scratch']
  %s0 = inlined_call_operand.vmem [shape: bf16[16,128], index: 0, kind: input, shape index: {}]
  %s1 = inlined_call_operand.vmem [shape: bf16[128,128], index: 1, kind: input, shape index: {}]
  %s2 = inlined_call_operand.vmem [shape: f32[16,128], index: 2, kind: output, shape index: {}]
  %s3 = sld [smem:[#allocation0]]
  $region22: #{linear_logits.1} parent=0
    _
  %s5 = ssub.s32 1, %s3
  %s6 = scalar_select 0, %s5, %s3
  // Predicated region
  $region2: #{linear_logits.1} parent=0 // pred_check
    _
  $region3: #{linear_logits.1} parent=0 // pred_check_branch
    %8 = sbr.rel (0) target = $region5
  $region4: #{linear_logits.1} parent=0 // pred_region
    _
  $region5: #{linear_logits.1} parent=0 // pred_fallthru
    _
  // Predicated region
  $region6: #{linear_logits.1} parent=0 // pred_check
    _
  $region7: #{linear_logits.1} parent=0 // pred_check_branch
    %10 = sbr.rel (0) target = $region9
  $region8: #{linear_logits.1} parent=0 // pred_region
    _
  $region9: #{linear_logits.1} parent=0 // pred_fallthru
    _
  %p12 = scmp.eq.s32.totalorder 0, 0
  // Predicated region
  $region10: #{linear_logits.1} parent=0 // pred_check
    %p13 = pneg %p12
  $region11: #{linear_logits.1} parent=0 // pred_check_branch
    %15 = sbr.rel (%p13) target = $region13
  $region12: #{linear_logits.1} parent=0 // pred_region
    %16 = vst [vmem:[%s2] sm:$0xff] 0.0
    %17 = vst [vmem:[%s2 + $0x8] sm:$0xff] 0.0
  $region13: #{linear_logits.1} parent=0 // pred_fallthru
    _
  %v18 = vld [vmem:[%s2] sm:$0xff]
  %v19 = vld [vmem:[%s2 + $0x8] sm:$0xff]
  %v20 = vld [vmem:[%s0] sm:$0xf]
  %v21 = vld [vmem:[%s0 + $0x4] sm:$0xf]
  %v22 = vld [vmem:[%s1] sm:$0xf]
  %v23 = vld [vmem:[%s1 + $0x4] sm:$0xf]
  %v24 = vld [vmem:[%s1 + $0x8] sm:$0xf]
  %v25 = vld [vmem:[%s1 + $0xc] sm:$0xf]
  %v26 = vld [vmem:[%s1 + $0x10] sm:$0xf]
  %v27 = vld [vmem:[%s1 + $0x14] sm:$0xf]
  %v28 = vld [vmem:[%s1 + $0x18] sm:$0xf]
  %v29 = vld [vmem:[%s1 + $0x1c] sm:$0xf]
  %v30 = vld [vmem:[%s1 + $0x20] sm:$0xf]
  %v31 = vld [vmem:[%s1 + $0x24] sm:$0xf]
  %v32 = vld [vmem:[%s1 + $0x28] sm:$0xf]
  %v33 = vld [vmem:[%s1 + $0x2c] sm:$0xf]
  %v34 = vld [vmem:[%s1 + $0x30] sm:$0xf]
  %v35 = vld [vmem:[%s1 + $0x34] sm:$0xf]
  %v36 = vld [vmem:[%s1 + $0x38] sm:$0xf]
  %v37 = vld [vmem:[%s1 + $0x3c] sm:$0xf]
  %v40 = vunpack.c.l.b16 %v20
  %v41 = vunpack.c.l.b16 %v21
  %v42 = vpack.c.b16 %v41, %v40
  %v60 = vunpack.c.l.b16 %v22
  %v61 = vunpack.c.l.b16 %v23
  %v62 = vunpack.c.l.b16 %v24
  %v63 = vunpack.c.l.b16 %v25
  %v64 = vunpack.c.l.b16 %v26
  %v65 = vunpack.c.l.b16 %v27
  %v66 = vunpack.c.l.b16 %v28
  %v67 = vunpack.c.l.b16 %v29
  %v68 = vunpack.c.l.b16 %v30
  %v69 = vunpack.c.l.b16 %v31
  %v70 = vunpack.c.l.b16 %v32
  %v71 = vunpack.c.l.b16 %v33
  %v72 = vunpack.c.l.b16 %v34
  %v73 = vunpack.c.l.b16 %v35
  %v74 = vunpack.c.l.b16 %v36
  %v75 = vunpack.c.l.b16 %v37
  %v76 = vpack.c.b16 %v61, %v60
  %v77 = vpack.c.b16 %v63, %v62
  %v78 = vpack.c.b16 %v65, %v64
  %v79 = vpack.c.b16 %v67, %v66
  %v80 = vpack.c.b16 %v69, %v68
  %v81 = vpack.c.b16 %v71, %v70
  %v82 = vpack.c.b16 %v73, %v72
  %v83 = vpack.c.b16 %v75, %v74
  %92 = vmatprep.subr.bf16.mxu0 0
  %93 = vmatpush1.bf16.msra.mxu0 %v76
  %94 = vmatprep.subr.bf16.mxu0 0
  %95 = vmatpush1.bf16.msra.mxu0 %v77
  %96 = vmatprep.subr.bf16.mxu0 0
  %97 = vmatpush1.bf16.msra.mxu0 %v78
  %98 = vmatprep.subr.bf16.mxu0 0
  %99 = vmatpush1.bf16.msra.mxu0 %v79
  %100 = vmatprep.subr.bf16.mxu0 0
  %101 = vmatpush1.bf16.msra.mxu0 %v80
  %102 = vmatprep.subr.bf16.mxu0 0
  %103 = vmatpush1.bf16.msra.mxu0 %v81
  %104 = vmatprep.subr.bf16.mxu0 0
  %105 = vmatpush1.bf16.msra.mxu0 %v82
  %106 = vmatprep.subr.bf16.mxu0 0
  %107 = vmatpush1.bf16.msra.mxu0 %v83
  %108 = vmatprep.subr.bf16.mxu0 0
  %109 = vmatpush1.bf16.msra.mxu0 0
  %110 = vmatprep.subr.bf16.mxu0 0
  %111 = vmatpush1.bf16.msra.mxu0 0
  %112 = vmatprep.subr.bf16.mxu0 0
  %113 = vmatpush1.bf16.msra.mxu0 0
  %114 = vmatprep.subr.bf16.mxu0 0
  %115 = vmatpush1.bf16.msra.mxu0 0
  %116 = vmatprep.subr.bf16.mxu0 0
  %117 = vmatpush1.bf16.msra.mxu0 0
  %118 = vmatprep.subr.bf16.mxu0 0
  %119 = vmatpush1.bf16.msra.mxu0 0
  %120 = vmatprep.subr.bf16.mxu0 0
  %121 = vmatpush1.bf16.msra.mxu0 0
  %122 = vmatprep.subr.bf16.mxu0 0
  %123 = vmatpush1.bf16.msra.mxu0 0
  %124 = vmatprep.mubr.bf16.mxu0 0
  %125 = vmatmul.mubr.bf16.gmra.mrb[0].mxu0 %v42
  %v126 = vpop.f32.mrb[0].mxu0
  %v127 = vadd.f32 0.0, %v126
  %v128 = vpop.f32.mrb[0].mxu0
  %v129 = vpop.f32.mrb[0].mxu0
  %v130 = vadd.f32 0.0, %v129
  %v131 = vpop.f32.mrb[0].mxu0
  %132 = vdwg.mxu0
  %v133 = vadd.f32 %v18, %v127
  %v134 = vadd.f32 %v19, %v130
  %135 = vst [vmem:[%s2] sm:$0xff] %v133
  %136 = vst [vmem:[%s2 + $0x8] sm:$0xff] %v134
  // Predicated region
  $region14: #{linear_logits.1} parent=0 // pred_check
    _
  $region15: #{linear_logits.1} parent=0 // pred_check_branch
    %138 = sbr.rel (0) target = $region17
  $region16: #{linear_logits.1} parent=0 // pred_region
    _
  $region17: #{linear_logits.1} parent=0 // pred_fallthru
    _
  // Predicated region
  $region18: #{linear_logits.1} parent=0 // pred_check
    _
  $region19: #{linear_logits.1} parent=0 // pred_check_branch
    %140 = sbr.rel (0) target = $region21
  $region20: #{linear_logits.1} parent=0 // pred_region
    _
  $region21: #{linear_logits.1} parent=0 // pred_fallthru
    _

</llo_original>
